<compile_context>
chip_gen: v6e
topology: v6e:2x2x1
jax: 0.10.0
libtpu: 0.0.40
codegen_flags: <defaults>
</compile_context>

<pallas_src>
import jax
import jax.numpy as jnp
from jax.experimental import pallas as pl
from jax.experimental.pallas import tpu as pltpu


# ----------------------------- Pallas kernel ---------------------------------
def gnn_kernel(x_ref, ei_ref, batch_ref,
               wconv_ref, bconv_ref, whead_ref, bhead_ref,
               out_ref):
    N = x_ref.shape[0]
    H = x_ref.shape[1]
    E = ei_ref.shape[1]
    G = out_ref.shape[0]

    src = ei_ref[0:1, :]                                                 # (1, E) int32
    dst = ei_ref[1:2, :]                                                 # (1, E) int32

    # ---- dense adjacency A[i, j] = #edges j -> i, built on the MXU from one-hots ----
    # (one-hots and edge counts <= 256 are exact in bf16)
    edge_iota = jax.lax.broadcasted_iota(jnp.int32, (N, E), 0)
    dst_oh = (edge_iota == dst).astype(jnp.bfloat16)                     # (N, E)
    src_oh = (edge_iota == src).astype(jnp.bfloat16)                     # (N, E)
    adj = jax.lax.dot_general(dst_oh, src_oh, (((1,), (1,)), ((), ())),
                              preferred_element_type=jnp.float32)        # (N, N) exact
    adj = adj.astype(jnp.bfloat16)

    # ---- membership indicator (exact 0/1 in bf16) + f32 inverse counts ----
    graph_iota = jax.lax.broadcasted_iota(jnp.int32, (G, N), 0)
    member = (graph_iota == batch_ref[...]).astype(jnp.float32)          # (G, N)
    counts = jnp.maximum(jnp.sum(member, axis=1, keepdims=True), 1.0)    # (G, 1) f32
    inv_counts = 1.0 / counts                                            # (G, 1) f32

    # ---- 3 GraphConv layers: h @ W_root + (adj @ h) @ W_nei + b ----
    # Two K=H dots accumulated in f32 (no lane-axis concat on the critical path).
    h = x_ref[...]                                                       # (N, H) f32, padded
    for layer, relu in ((0, True), (1, True), (2, False)):
        h_bf = h.astype(jnp.bfloat16)
        agg = jnp.dot(adj, h_bf,
                      preferred_element_type=jnp.float32).astype(jnp.bfloat16)   # (N, H)
        w_root = wconv_ref[layer, :H, :]                                 # (H, H) bf16
        w_nei = wconv_ref[layer, H:, :]                                  # (H, H) bf16
        h = (jnp.dot(h_bf, w_root, preferred_element_type=jnp.float32)
             + jnp.dot(agg, w_nei, preferred_element_type=jnp.float32)
             + bconv_ref[layer])                                         # (N, H) f32
        if relu:
            h = jnp.maximum(h, 0.0)

    # ---- global mean pool (indicator matmul, then f32 1/count scale) ----
    pooled = jnp.dot(member.astype(jnp.bfloat16), h.astype(jnp.bfloat16),
                     preferred_element_type=jnp.float32) * inv_counts    # (G, H) f32

    # ---- merged linear heads (dropout = eval-mode identity) ----
    out_ref[...] = (jnp.dot(pooled.astype(jnp.bfloat16), whead_ref[...],
                            preferred_element_type=jnp.float32)
                    + bhead_ref[...])                                    # (G, 2)


# ------------------------------ wrapper --------------------------------------
def pack_params(params, in_channels):
    """Pack 13 small tensors into 4 slabs; pad conv1 weights so all layers share (2H,H)."""
    H = params["w1_root"].shape[1]
    pad = ((0, H - in_channels), (0, 0))
    w1r = jnp.pad(params["w1_root"], pad)
    w1n = jnp.pad(params["w1_nei"], pad)
    w_conv = jnp.stack([
        jnp.concatenate([w1r, w1n], axis=0),
        jnp.concatenate([params["w2_root"], params["w2_nei"]], axis=0),
        jnp.concatenate([params["w3_root"], params["w3_nei"]], axis=0),
    ]).astype(jnp.bfloat16)                                              # (3, 2H, H)
    b_conv = jnp.stack([params["b1"], params["b2"], params["b3"]])       # (3, 1, H) f32
    w_head = jnp.concatenate([params["w_lin1"], params["w_lin2"]],
                             axis=1).astype(jnp.bfloat16)                # (H, 2)
    b_head = jnp.concatenate([params["b_lin1"], params["b_lin2"]],
                             axis=1)                                     # (1, 2)  f32
    return w_conv, b_conv, w_head, b_head


def gnn_forward(x, edge_index, batch, params, num_graphs):
    """x: (N, 3) float32, edge_index: (2, E) int32, batch: (N,) int32."""
    N, f_in = x.shape
    H = params["w1_root"].shape[1]
    E = edge_index.shape[1]
    # bf16 edge counts are exact only up to 256 parallel edges between one node pair
    assert E <= 256, "multigraph edge multiplicity may exceed exact bf16 counts"

    # zero-pad feature dim 3 -> H so the conv1 matmul shares the (2H, H) weight slab
    x_pad = jnp.pad(x.astype(jnp.float32), ((0, 0), (0, H - f_in)))      # (N, H)
    ei = edge_index.astype(jnp.int32)                                    # (2, E) single slab
    batch2 = batch.reshape(1, N).astype(jnp.int32)                       # (1, N)
    w_conv, b_conv, w_head, b_head = pack_params(params, f_in)

    vmem = pl.BlockSpec(memory_space=pltpu.MemorySpace.VMEM)
    out = pl.pallas_call(
        gnn_kernel,
        out_shape=jax.ShapeDtypeStruct((num_graphs, 2), jnp.float32),
        in_specs=[vmem] * 7,
        out_specs=vmem,
        compiler_params=pltpu.CompilerParams(
            vmem_limit_bytes=32 * 1024 * 1024),
    )(x_pad, ei, batch2, w_conv, b_conv, w_head, b_head)

    return [out[:, 0:1], out[:, 1:2]]


# --------------------------- pure-JAX f32 reference ----------------------------
def gnn_reference(x, edge_index, batch, params, num_graphs):
    src, dst = edge_index[0], edge_index[1]
    N = x.shape[0]
    adj = jnp.zeros((N, N), jnp.float32).at[dst, src].add(1.0)

    def conv(h, wr, wn, b):
        return h @ wr + (adj @ h) @ wn + b

    h = jnp.maximum(conv(x, params["w1_root"], params["w1_nei"], params["b1"]), 0.0)
    h = jnp.maximum(conv(h, params["w2_root"], params["w2_nei"], params["b2"]), 0.0)
    h = conv(h, params["w3_root"], params["w3_nei"], params["b3"])
    onehot = (batch[None, :] == jnp.arange(num_graphs)[:, None]).astype(jnp.float32)
    counts = jnp.maximum(onehot.sum(axis=1, keepdims=True), 1.0)
    pooled = (onehot / counts) @ h
    o1 = pooled @ params["w_lin1"] + params["b_lin1"]
    o2 = pooled @ params["w_lin2"] + params["b_lin2"]
    return o1, o2


# ------------------------- deterministic parameters ---------------------------
def init_params(hidden_channels, in_channels=3, key=jax.random.PRNGKey(12345)):
    ks = jax.random.split(key, 10)

    def lin(k, fan_in, fan_out):
        bound = 1.0 / jnp.sqrt(jnp.float32(fan_in))
        return jax.random.uniform(k, (fan_in, fan_out), jnp.float32, -bound, bound)

    H = hidden_channels
    return {
        "w1_root": lin(ks[0], in_channels, H),
        "w1_nei":  lin(ks[1], in_channels, H),
        "b1":      jnp.zeros((1, H), jnp.float32),
        "w2_root": lin(ks[2], H, H),
        "w2_nei":  lin(ks[3], H, H),
        "b2":      jnp.zeros((1, H), jnp.float32),
        "w3_root": lin(ks[4], H, H),
        "w3_nei":  lin(ks[5], H, H),
        "b3":      jnp.zeros((1, H), jnp.float32),
        "w_lin1":  lin(ks[6], H, 1),
        "b_lin1":  jnp.zeros((1, 1), jnp.float32),
        "w_lin2":  lin(ks[7], H, 1),
        "b_lin2":  jnp.zeros((1, 1), jnp.float32),
    }


# ---------------------------------- main --------------------------------------
if __name__ == "__main__":
    key = jax.random.PRNGKey(0)
    k_x, k_src, k_dst = jax.random.split(key, 3)

    N = 32              # nodes
    E = 64              # edges
    G = 4               # graphs in batch
    HIDDEN = 32
    IN_FEATS = 3

    x = jax.random.normal(k_x, (N, IN_FEATS), jnp.float32)
    nodes_per_graph = N // G
    graph_of_edge = jax.random.randint(k_src, (E,), 0, G)
    src_local = jax.random.randint(k_src, (E,), 0, nodes_per_graph)
    dst_local = jax.random.randint(k_dst, (E,), 0, nodes_per_graph)
    src = graph_of_edge * nodes_per_graph + src_local
    dst = graph_of_edge * nodes_per_graph + dst_local
    edge_index = jnp.stack([src, dst]).astype(jnp.int32)                 # (2, E)
    batch = jnp.repeat(jnp.arange(G, dtype=jnp.int32), nodes_per_graph)  # (N,)

    params = init_params(HIDDEN, IN_FEATS)

    out1, out2 = gnn_forward(x, edge_index, batch, params, num_graphs=G)
    jax.block_until_ready(out1)
    jax.block_until_ready(out2)

    ref1, ref2 = gnn_reference(x, edge_index, batch, params, num_graphs=G)

    assert out1.shape == (G, 1) and out2.shape == (G, 1)
    # loosened tolerance: activations/weights are bf16 on the MXU (graph structure and
    # pool normalization are exact; f32 accumulation throughout)
    assert bool(jnp.allclose(out1, ref1, rtol=1e-1, atol=1e-1))
    assert bool(jnp.allclose(out2, ref2, rtol=1e-1, atol=1e-1))
    print("KERNEL_OK")
</pallas_src>

<mosaic_0001>
module attributes {stable_mosaic.version = 11 : i64} {
  func.func @gnn_kernel(%arg0: memref<32x32xf32, #tpu.memory_space<vmem>>, %arg1: memref<2x64xi32, #tpu.memory_space<vmem>>, %arg2: memref<1x32xi32, #tpu.memory_space<vmem>>, %arg3: memref<3x64x32xbf16, #tpu.memory_space<vmem>>, %arg4: memref<3x1x32xf32, #tpu.memory_space<vmem>>, %arg5: memref<32x2xbf16, #tpu.memory_space<vmem>>, %arg6: memref<1x2xf32, #tpu.memory_space<vmem>>, %arg7: memref<4x2xf32, #tpu.memory_space<vmem>>) attributes {dimension_semantics = [], scalar_prefetch = 0 : i64, scratch_operands = 0 : i64, tpu.core_type = #tpu.core_type<tc>} {
    %c0 = arith.constant 0 : index
    %c0_0 = arith.constant 0 : index
    %0 = vector.load %arg1[%c0, %c0_0] : memref<2x64xi32, #tpu.memory_space<vmem>>, vector<1x64xi32>
    %c1 = arith.constant 1 : index
    %c0_1 = arith.constant 0 : index
    %1 = vector.load %arg1[%c1, %c0_1] : memref<2x64xi32, #tpu.memory_space<vmem>>, vector<1x64xi32>
    %2 = tpu.iota {dimensions = array<i32: 0>} : vector<32x64xi32>
    %3 = vector.broadcast %1 : vector<1x64xi32> to vector<32x64xi32>
    %4 = arith.cmpi eq, %2, %3 : vector<32x64xi32>
    %5 = arith.extui %4 : vector<32x64xi1> to vector<32x64xi32>
    %6 = arith.sitofp %5 : vector<32x64xi32> to vector<32x64xf32>
    %7 = arith.truncf %6 : vector<32x64xf32> to vector<32x64xbf16>
    %8 = vector.broadcast %0 : vector<1x64xi32> to vector<32x64xi32>
    %9 = arith.cmpi eq, %2, %8 : vector<32x64xi32>
    %10 = arith.extui %9 : vector<32x64xi1> to vector<32x64xi32>
    %11 = arith.sitofp %10 : vector<32x64xi32> to vector<32x64xf32>
    %12 = arith.truncf %11 : vector<32x64xf32> to vector<32x64xbf16>
    %cst = arith.constant dense<0.000000e+00> : vector<32x32xf32>
    %13 = tpu.matmul %7, %12, %cst {dimension_numbers = #tpu.dot_dimension_numbers<[1], [1], [0], [0], [0, 0, 1, 0], [], []>} : vector<32x64xbf16>, vector<32x64xbf16>, vector<32x32xf32> -> vector<32x32xf32>
    %14 = arith.truncf %13 : vector<32x32xf32> to vector<32x32xbf16>
    %15 = tpu.iota {dimensions = array<i32: 0>} : vector<4x32xi32>
    %c0_2 = arith.constant 0 : index
    %c0_3 = arith.constant 0 : index
    %16 = vector.load %arg2[%c0_2, %c0_3] : memref<1x32xi32, #tpu.memory_space<vmem>>, vector<1x32xi32>
    %17 = vector.broadcast %16 : vector<1x32xi32> to vector<4x32xi32>
    %18 = arith.cmpi eq, %15, %17 : vector<4x32xi32>
    %19 = arith.extui %18 : vector<4x32xi1> to vector<4x32xi32>
    %20 = arith.sitofp %19 : vector<4x32xi32> to vector<4x32xf32>
    %cst_4 = arith.constant dense<0.000000e+00> : vector<4xf32>
    %21 = vector.multi_reduction <add>, %20, %cst_4 [1] : vector<4x32xf32> to vector<4xf32>
    %22 = vector.shape_cast %21 : vector<4xf32> to vector<4x1xf32>
    %cst_5 = arith.constant 1.000000e+00 : f32
    %23 = vector.broadcast %cst_5 : f32 to vector<4x1xf32>
    %24 = arith.maximumf %22, %23 : vector<4x1xf32>
    %cst_6 = arith.constant 1.000000e+00 : f32
    %25 = vector.broadcast %cst_6 : f32 to vector<4x1xf32>
    %26 = arith.divf %25, %24 : vector<4x1xf32>
    %c0_7 = arith.constant 0 : index
    %c0_8 = arith.constant 0 : index
    %27 = vector.load %arg0[%c0_7, %c0_8] : memref<32x32xf32, #tpu.memory_space<vmem>>, vector<32x32xf32>
    %28 = arith.truncf %27 : vector<32x32xf32> to vector<32x32xbf16>
    %cst_9 = arith.constant dense<0.000000e+00> : vector<32x32xf32>
    %29 = tpu.matmul %14, %28, %cst_9 {dimension_numbers = #tpu.dot_dimension_numbers<[1], [0], [0], [1], [0, 0, 1, 1], [], []>} : vector<32x32xbf16>, vector<32x32xbf16>, vector<32x32xf32> -> vector<32x32xf32>
    %30 = arith.truncf %29 : vector<32x32xf32> to vector<32x32xbf16>
    %c0_10 = arith.constant 0 : index
    %c0_11 = arith.constant 0 : index
    %c0_12 = arith.constant 0 : index
    %31 = vector.load %arg3[%c0_10, %c0_11, %c0_12] : memref<3x64x32xbf16, #tpu.memory_space<vmem>>, vector<1x32x32xbf16>
    %32 = vector.shape_cast %31 : vector<1x32x32xbf16> to vector<32x32xbf16>
    %c0_13 = arith.constant 0 : index
    %c32 = arith.constant 32 : index
    %c0_14 = arith.constant 0 : index
    %33 = vector.load %arg3[%c0_13, %c32, %c0_14] : memref<3x64x32xbf16, #tpu.memory_space<vmem>>, vector<1x32x32xbf16>
    %34 = vector.shape_cast %33 : vector<1x32x32xbf16> to vector<32x32xbf16>
    %cst_15 = arith.constant dense<0.000000e+00> : vector<32x32xf32>
    %35 = tpu.matmul %28, %32, %cst_15 {dimension_numbers = #tpu.dot_dimension_numbers<[1], [0], [0], [1], [0, 0, 1, 1], [], []>} : vector<32x32xbf16>, vector<32x32xbf16>, vector<32x32xf32> -> vector<32x32xf32>
    %cst_16 = arith.constant dense<0.000000e+00> : vector<32x32xf32>
    %36 = tpu.matmul %30, %34, %cst_16 {dimension_numbers = #tpu.dot_dimension_numbers<[1], [0], [0], [1], [0, 0, 1, 1], [], []>} : vector<32x32xbf16>, vector<32x32xbf16>, vector<32x32xf32> -> vector<32x32xf32>
    %37 = arith.addf %35, %36 : vector<32x32xf32>
    %c0_17 = arith.constant 0 : index
    %c0_18 = arith.constant 0 : index
    %c0_19 = arith.constant 0 : index
    %38 = vector.load %arg4[%c0_17, %c0_18, %c0_19] : memref<3x1x32xf32, #tpu.memory_space<vmem>>, vector<1x1x32xf32>
    %39 = vector.shape_cast %38 : vector<1x1x32xf32> to vector<1x32xf32>
    %40 = vector.broadcast %39 : vector<1x32xf32> to vector<32x32xf32>
    %41 = arith.addf %37, %40 : vector<32x32xf32>
    %cst_20 = arith.constant 0.000000e+00 : f32
    %42 = vector.broadcast %cst_20 : f32 to vector<32x32xf32>
    %43 = arith.maximumf %41, %42 : vector<32x32xf32>
    %44 = arith.truncf %43 : vector<32x32xf32> to vector<32x32xbf16>
    %cst_21 = arith.constant dense<0.000000e+00> : vector<32x32xf32>
    %45 = tpu.matmul %14, %44, %cst_21 {dimension_numbers = #tpu.dot_dimension_numbers<[1], [0], [0], [1], [0, 0, 1, 1], [], []>} : vector<32x32xbf16>, vector<32x32xbf16>, vector<32x32xf32> -> vector<32x32xf32>
    %46 = arith.truncf %45 : vector<32x32xf32> to vector<32x32xbf16>
    %c1_22 = arith.constant 1 : index
    %c0_23 = arith.constant 0 : index
    %c0_24 = arith.constant 0 : index
    %47 = vector.load %arg3[%c1_22, %c0_23, %c0_24] : memref<3x64x32xbf16, #tpu.memory_space<vmem>>, vector<1x32x32xbf16>
    %48 = vector.shape_cast %47 : vector<1x32x32xbf16> to vector<32x32xbf16>
    %c1_25 = arith.constant 1 : index
    %c32_26 = arith.constant 32 : index
    %c0_27 = arith.constant 0 : index
    %49 = vector.load %arg3[%c1_25, %c32_26, %c0_27] : memref<3x64x32xbf16, #tpu.memory_space<vmem>>, vector<1x32x32xbf16>
    %50 = vector.shape_cast %49 : vector<1x32x32xbf16> to vector<32x32xbf16>
    %cst_28 = arith.constant dense<0.000000e+00> : vector<32x32xf32>
    %51 = tpu.matmul %44, %48, %cst_28 {dimension_numbers = #tpu.dot_dimension_numbers<[1], [0], [0], [1], [0, 0, 1, 1], [], []>} : vector<32x32xbf16>, vector<32x32xbf16>, vector<32x32xf32> -> vector<32x32xf32>
    %cst_29 = arith.constant dense<0.000000e+00> : vector<32x32xf32>
    %52 = tpu.matmul %46, %50, %cst_29 {dimension_numbers = #tpu.dot_dimension_numbers<[1], [0], [0], [1], [0, 0, 1, 1], [], []>} : vector<32x32xbf16>, vector<32x32xbf16>, vector<32x32xf32> -> vector<32x32xf32>
    %53 = arith.addf %51, %52 : vector<32x32xf32>
    %c1_30 = arith.constant 1 : index
    %c0_31 = arith.constant 0 : index
    %c0_32 = arith.constant 0 : index
    %54 = vector.load %arg4[%c1_30, %c0_31, %c0_32] : memref<3x1x32xf32, #tpu.memory_space<vmem>>, vector<1x1x32xf32>
    %55 = vector.shape_cast %54 : vector<1x1x32xf32> to vector<1x32xf32>
    %56 = vector.broadcast %55 : vector<1x32xf32> to vector<32x32xf32>
    %57 = arith.addf %53, %56 : vector<32x32xf32>
    %cst_33 = arith.constant 0.000000e+00 : f32
    %58 = vector.broadcast %cst_33 : f32 to vector<32x32xf32>
    %59 = arith.maximumf %57, %58 : vector<32x32xf32>
    %60 = arith.truncf %59 : vector<32x32xf32> to vector<32x32xbf16>
    %cst_34 = arith.constant dense<0.000000e+00> : vector<32x32xf32>
    %61 = tpu.matmul %14, %60, %cst_34 {dimension_numbers = #tpu.dot_dimension_numbers<[1], [0], [0], [1], [0, 0, 1, 1], [], []>} : vector<32x32xbf16>, vector<32x32xbf16>, vector<32x32xf32> -> vector<32x32xf32>
    %62 = arith.truncf %61 : vector<32x32xf32> to vector<32x32xbf16>
    %c2 = arith.constant 2 : index
    %c0_35 = arith.constant 0 : index
    %c0_36 = arith.constant 0 : index
    %63 = vector.load %arg3[%c2, %c0_35, %c0_36] : memref<3x64x32xbf16, #tpu.memory_space<vmem>>, vector<1x32x32xbf16>
    %64 = vector.shape_cast %63 : vector<1x32x32xbf16> to vector<32x32xbf16>
    %c2_37 = arith.constant 2 : index
    %c32_38 = arith.constant 32 : index
    %c0_39 = arith.constant 0 : index
    %65 = vector.load %arg3[%c2_37, %c32_38, %c0_39] : memref<3x64x32xbf16, #tpu.memory_space<vmem>>, vector<1x32x32xbf16>
    %66 = vector.shape_cast %65 : vector<1x32x32xbf16> to vector<32x32xbf16>
    %cst_40 = arith.constant dense<0.000000e+00> : vector<32x32xf32>
    %67 = tpu.matmul %60, %64, %cst_40 {dimension_numbers = #tpu.dot_dimension_numbers<[1], [0], [0], [1], [0, 0, 1, 1], [], []>} : vector<32x32xbf16>, vector<32x32xbf16>, vector<32x32xf32> -> vector<32x32xf32>
    %cst_41 = arith.constant dense<0.000000e+00> : vector<32x32xf32>
    %68 = tpu.matmul %62, %66, %cst_41 {dimension_numbers = #tpu.dot_dimension_numbers<[1], [0], [0], [1], [0, 0, 1, 1], [], []>} : vector<32x32xbf16>, vector<32x32xbf16>, vector<32x32xf32> -> vector<32x32xf32>
    %69 = arith.addf %67, %68 : vector<32x32xf32>
    %c2_42 = arith.constant 2 : index
    %c0_43 = arith.constant 0 : index
    %c0_44 = arith.constant 0 : index
    %70 = vector.load %arg4[%c2_42, %c0_43, %c0_44] : memref<3x1x32xf32, #tpu.memory_space<vmem>>, vector<1x1x32xf32>
    %71 = vector.shape_cast %70 : vector<1x1x32xf32> to vector<1x32xf32>
    %72 = vector.broadcast %71 : vector<1x32xf32> to vector<32x32xf32>
    %73 = arith.addf %69, %72 : vector<32x32xf32>
    %74 = arith.truncf %20 : vector<4x32xf32> to vector<4x32xbf16>
    %75 = arith.truncf %73 : vector<32x32xf32> to vector<32x32xbf16>
    %cst_45 = arith.constant dense<0.000000e+00> : vector<4x32xf32>
    %76 = tpu.matmul %74, %75, %cst_45 {dimension_numbers = #tpu.dot_dimension_numbers<[1], [0], [0], [1], [0, 0, 1, 1], [], []>} : vector<4x32xbf16>, vector<32x32xbf16>, vector<4x32xf32> -> vector<4x32xf32>
    %77 = vector.broadcast %26 : vector<4x1xf32> to vector<4x32xf32>
    %78 = arith.mulf %76, %77 : vector<4x32xf32>
    %79 = arith.truncf %78 : vector<4x32xf32> to vector<4x32xbf16>
    %c0_46 = arith.constant 0 : index
    %c0_47 = arith.constant 0 : index
    %80 = vector.load %arg5[%c0_46, %c0_47] : memref<32x2xbf16, #tpu.memory_space<vmem>>, vector<32x2xbf16>
    %cst_48 = arith.constant dense<0.000000e+00> : vector<4x2xf32>
    %81 = tpu.matmul %79, %80, %cst_48 {dimension_numbers = #tpu.dot_dimension_numbers<[1], [0], [0], [1], [0, 0, 1, 1], [], []>} : vector<4x32xbf16>, vector<32x2xbf16>, vector<4x2xf32> -> vector<4x2xf32>
    %c0_49 = arith.constant 0 : index
    %c0_50 = arith.constant 0 : index
    %82 = vector.load %arg6[%c0_49, %c0_50] : memref<1x2xf32, #tpu.memory_space<vmem>>, vector<1x2xf32>
    %83 = vector.broadcast %82 : vector<1x2xf32> to vector<4x2xf32>
    %84 = arith.addf %81, %83 : vector<4x2xf32>
    %c0_51 = arith.constant 0 : index
    %c0_52 = arith.constant 0 : index
    %85 = vector.load %arg7[%c0_51, %c0_52] : memref<4x2xf32, #tpu.memory_space<vmem>>, vector<4x2xf32>
    tpu.vector_store %arg7[%c0_51, %c0_52], %84 {strides = array<i32>} : memref<4x2xf32, #tpu.memory_space<vmem>>, vector<4x2xf32>,
    return
  }
}

</mosaic_0001>

<llo_original>
// kernel: tpu_custom_call.1
$region0: #{tpu_custom_call.1}
  #allocation0 [shape = 'u32[]', space=smem, size = 0x4, offset = 0x4, fixed_abs, tag = 'smem constant byte address 0x4 - core index']
  #allocation1 [shape = 'u32[144,128]{1,0:T(1,128)}', space=vmem, size = 0x12000, scoped, tag = 'internal scratch']
  %s0 = inlined_call_operand.vmem [shape: f32[32,32], index: 0, kind: input, shape index: {}]
  %s1 = inlined_call_operand.vmem [shape: s32[2,64], index: 1, kind: input, shape index: {}]
  %s2 = inlined_call_operand.vmem [shape: s32[1,32], index: 2, kind: input, shape index: {}]
  %s3 = inlined_call_operand.vmem [shape: bf16[3,64,32], index: 3, kind: input, shape index: {}]
  %s4 = inlined_call_operand.vmem [shape: f32[3,1,32], index: 4, kind: input, shape index: {}]
  %s5 = inlined_call_operand.vmem [shape: bf16[32,2], index: 5, kind: input, shape index: {}]
  %s6 = inlined_call_operand.vmem [shape: f32[1,2], index: 6, kind: input, shape index: {}]
  %s7 = inlined_call_operand.vmem [shape: f32[4,2], index: 7, kind: output, shape index: {}]
  %s8 = sld [smem:[#allocation0]]
  $region38: #{tpu_custom_call.1} parent=0
    _
  %s10 = ssub.s32 1, %s8
  %s11 = scalar_select 0, %s10, %s8
  // Predicated region
  $region2: #{tpu_custom_call.1} parent=0 // pred_check
    _
  $region3: #{tpu_custom_call.1} parent=0 // pred_check_branch
    %13 = sbr.rel (0) target = $region5
  $region4: #{tpu_custom_call.1} parent=0 // pred_region
    _
  $region5: #{tpu_custom_call.1} parent=0 // pred_fallthru
    _
  // Predicated region
  $region6: #{tpu_custom_call.1} parent=0 // pred_check
    _
  $region7: #{tpu_custom_call.1} parent=0 // pred_check_branch
    %15 = sbr.rel (0) target = $region9
  $region8: #{tpu_custom_call.1} parent=0 // pred_region
    _
  $region9: #{tpu_custom_call.1} parent=0 // pred_fallthru
    _
  // Predicated region
  $region10: #{tpu_custom_call.1} parent=0 // pred_check
    _
  $region11: #{tpu_custom_call.1} parent=0 // pred_check_branch
    %17 = sbr.rel (0) target = $region13
  $region12: #{tpu_custom_call.1} parent=0 // pred_region
    _
  $region13: #{tpu_custom_call.1} parent=0 // pred_fallthru
    _
  // Predicated region
  $region14: #{tpu_custom_call.1} parent=0 // pred_check
    _
  $region15: #{tpu_custom_call.1} parent=0 // pred_check_branch
    %19 = sbr.rel (0) target = $region17
  $region16: #{tpu_custom_call.1} parent=0 // pred_region
    _
  $region17: #{tpu_custom_call.1} parent=0 // pred_fallthru
    _
  // Predicated region
  $region18: #{tpu_custom_call.1} parent=0 // pred_check
    _
  $region19: #{tpu_custom_call.1} parent=0 // pred_check_branch
    %21 = sbr.rel (0) target = $region21
  $region20: #{tpu_custom_call.1} parent=0 // pred_region
    _
  $region21: #{tpu_custom_call.1} parent=0 // pred_fallthru
    _
  // Predicated region
  $region22: #{tpu_custom_call.1} parent=0 // pred_check
    _
  $region23: #{tpu_custom_call.1} parent=0 // pred_check_branch
    %23 = sbr.rel (0) target = $region25
  $region24: #{tpu_custom_call.1} parent=0 // pred_region
    _
  $region25: #{tpu_custom_call.1} parent=0 // pred_fallthru
    _
  // Predicated region
  $region26: #{tpu_custom_call.1} parent=0 // pred_check
    _
  $region27: #{tpu_custom_call.1} parent=0 // pred_check_branch
    %25 = sbr.rel (0) target = $region29
  $region28: #{tpu_custom_call.1} parent=0 // pred_region
    _
  $region29: #{tpu_custom_call.1} parent=0 // pred_fallthru
    _
  %v27 = vld [vmem:[%s1] sm:$0x1]
  %v28 = vld [vmem:[%s1 + $0x1] sm:$0x1]
  %v29 = vlaneseq
  %v30 = vshrl.u32 %v29, 7
  %v31 = vadd.s32 %v30, 8
  %v32 = vadd.s32 %v30, 16
  %v33 = vadd.s32 %v30, 24
  %v34 = vlaneseq
  %v35 = vshrl.u32 %v34, 7
  %v36 = vsub.s32 0, %v35
  %v37 = vrot.slane %v28, %v36
  %vm38 = vcmp.eq.s32.totalorder %v30, %v37
  %vm39 = vcmp.eq.s32.totalorder %v31, %v37
  %vm40 = vcmp.eq.s32.totalorder %v32, %v37
  %vm41 = vcmp.eq.s32.totalorder %v33, %v37
  %v42 = vsel %vm38, 1, 0
  %v43 = vsel %vm39, 1, 0
  %v44 = vsel %vm40, 1, 0
  %v45 = vsel %vm41, 1, 0
  %v46 = vcvt.s32.f32 %v42
  %v47 = vcvt.s32.f32 %v43
  %v48 = vcvt.s32.f32 %v44
  %v49 = vcvt.s32.f32 %v45
  %v50 = vpack.c.bf16 %v47, %v46
  %v51 = vpack.c.bf16 %v49, %v48
  %v52 = vlaneseq
  %v53 = vshrl.u32 %v52, 7
  %v54 = vsub.s32 0, %v53
  %v55 = vrot.slane %v27, %v54
  %vm56 = vcmp.eq.s32.totalorder %v30, %v55
  %vm57 = vcmp.eq.s32.totalorder %v31, %v55
  %vm58 = vcmp.eq.s32.totalorder %v32, %v55
  %vm59 = vcmp.eq.s32.totalorder %v33, %v55
  %v60 = vsel %vm56, 1, 0
  %v61 = vsel %vm57, 1, 0
  %v62 = vsel %vm58, 1, 0
  %v63 = vsel %vm59, 1, 0
  %v64 = vcvt.s32.f32 %v60
  %v65 = vcvt.s32.f32 %v61
  %v66 = vcvt.s32.f32 %v62
  %v67 = vcvt.s32.f32 %v63
  %v68 = vpack.c.bf16 %v65, %v64
  %v69 = vpack.c.bf16 %v67, %v66
  %vm70 = vcmask 523264
  %v72 = vsel %vm70, %v50, 0
  %v75 = vsel %vm70, %v51, 0
  %v78 = vsel %vm70, %v68, 0
  %v81 = vsel %vm70, %v69, 0
  %83 = vmatprep.subr.bf16.mxu0 0
  %84 = vmatpush1.bf16.xpose.msra.mxu0 0
  %85 = vmatprep.subr.bf16.mxu0 0
  %86 = vmatpush1.bf16.xpose.msra.mxu0 0
  %87 = vmatprep.subr.bf16.mxu0 0
  %88 = vmatpush1.bf16.xpose.msra.mxu0 0
  %89 = vmatprep.subr.bf16.mxu0 0
  %90 = vmatpush1.bf16.xpose.msra.mxu0 0
  %91 = vmatprep.subr.bf16.mxu0 0
  %92 = vmatpush1.bf16.xpose.msra.mxu0 0
  %93 = vmatprep.subr.bf16.mxu0 0
  %94 = vmatpush1.bf16.xpose.msra.mxu0 0
  %95 = vmatprep.subr.bf16.mxu0 0
  %96 = vmatpush1.bf16.xpose.msra.mxu0 %v81
  %97 = vmatprep.subr.bf16.mxu0 0
  %98 = vmatpush1.bf16.xpose.msra.mxu0 %v78
  %99 = vmatprep.subr.bf16.mxu0 0
  %100 = vmatpush2.bf16.xpose.msra.mxu0 0
  %101 = vmatprep.subr.bf16.mxu0 0
  %102 = vmatpush2.bf16.xpose.msra.mxu0 0
  %103 = vmatprep.subr.bf16.mxu0 0
  %104 = vmatpush2.bf16.xpose.msra.mxu0 0
  %105 = vmatprep.subr.bf16.mxu0 0
  %106 = vmatpush2.bf16.xpose.msra.mxu0 0
  %107 = vmatprep.subr.bf16.mxu0 0
  %108 = vmatpush2.bf16.xpose.msra.mxu0 0
  %109 = vmatprep.subr.bf16.mxu0 0
  %110 = vmatpush2.bf16.xpose.msra.mxu0 0
  %111 = vmatprep.subr.bf16.mxu0 0
  %112 = vmatpush2.bf16.xpose.msra.mxu0 0
  %113 = vmatprep.subr.bf16.mxu0 0
  %114 = vmatpush2.bf16.xpose.msra.mxu0 0
  %115 = vmatprep.mubr.bf16.mxu0 0
  %116 = vmatmul.mubr.bf16.gmra.mxu0 %v72
  %v117 = vpop.f32.mrf.mxu0
  %v118 = vadd.f32 0.0, %v117
  %v119 = vpop.f32.mrf.mxu0
  %v120 = vpop.f32.mrf.mxu0
  %v121 = vadd.f32 0.0, %v120
  %v122 = vpop.f32.mrf.mxu0
  %123 = vmatprep.mubr.bf16.mxu0 0
  %124 = vmatmul.mubr.bf16.gmra.mxu0 %v75
  %v125 = vpop.f32.mrf.mxu0
  %v126 = vadd.f32 0.0, %v125
  %v127 = vpop.f32.mrf.mxu0
  %v128 = vpop.f32.mrf.mxu0
  %v129 = vadd.f32 0.0, %v128
  %v130 = vpop.f32.mrf.mxu0
  %131 = vdwg.mxu0
  %v132 = vpack.c.bf16 %v121, %v118
  %v133 = vpack.c.bf16 %v129, %v126
  %v134 = vld [vmem:[%s2] sm:$0x1]
  %v135 = vlaneseq
  %v136 = vshrl.u32 %v135, 7
  %v137 = vsub.s32 0, %v136
  %v138 = vrot.slane %v134, %v137
  %vm139 = vcmp.eq.s32.totalorder %v30, %v138
  %v140 = vsel %vm139, 1, 0
  %v141 = vcvt.s32.f32 %v140
  %vm142 = vcmask 257024
  %v143 = vsel %vm142, %v141, 0.0
  %144 = vadd.xlane.f32.xlu0 %v143
  %v145 = vpop.xlane.xlu0 %144
  %v146 = vmax.f32 %v145, 1.0
  %v147 = vrcp.pop %v146
  %v148 = vmul.f32 1.0, %v147
  %v149 = vld [vmem:[%s0] sm:$0xff]
  %v150 = vld [vmem:[%s0 + $0x8] sm:$0xff]
  %v151 = vld [vmem:[%s0 + $0x10] sm:$0xff]
  %v152 = vld [vmem:[%s0 + $0x18] sm:$0xff]
  %v153 = vpack.c.bf16 %v150, %v149
  %v154 = vpack.c.bf16 %v152, %v151
  %vm155 = vcmask 261120
  %v157 = vsel %vm155, %v132, 0
  %v160 = vsel %vm155, %v133, 0
  %162 = vmatprep.subr.bf16.mxu0 0
  %163 = vmatpush1.bf16.msra.mxu0 0
  %164 = vmatprep.subr.bf16.mxu0 0
  %165 = vmatpush1.bf16.msra.mxu0 0
  %166 = vmatprep.subr.bf16.mxu0 0
  %167 = vmatpush1.bf16.msra.mxu0 0
  %168 = vmatprep.subr.bf16.mxu0 0
  %169 = vmatpush1.bf16.msra.mxu0 0
  %170 = vmatprep.subr.bf16.mxu0 0
  %171 = vmatpush1.bf16.msra.mxu0 0
  %172 = vmatprep.subr.bf16.mxu0 0
  %173 = vmatpush1.bf16.msra.mxu0 0
  %174 = vmatprep.subr.bf16.mxu0 0
  %175 = vmatpush1.bf16.msra.mxu0 %v154
  %176 = vmatprep.subr.bf16.mxu0 0
  %177 = vmatpush1.bf16.msra.mxu0 %v153
  %178 = vmatprep.subr.bf16.mxu0 0
  %179 = vmatpush2.bf16.msra.mxu0 0
  %180 = vmatprep.subr.bf16.mxu0 0
  %181 = vmatpush2.bf16.msra.mxu0 0
  %182 = vmatprep.subr.bf16.mxu0 0
  %183 = vmatpush2.bf16.msra.mxu0 0
  %184 = vmatprep.subr.bf16.mxu0 0
  %185 = vmatpush2.bf16.msra.mxu0 0
  %186 = vmatprep.subr.bf16.mxu0 0
  %187 = vmatpush2.bf16.msra.mxu0 0
  %188 = vmatprep.subr.bf16.mxu0 0
  %189 = vmatpush2.bf16.msra.mxu0 0
  %190 = vmatprep.subr.bf16.mxu0 0
  %191 = vmatpush2.bf16.msra.mxu0 0
  %192 = vmatprep.subr.bf16.mxu0 0
  %193 = vmatpush2.bf16.msra.mxu0 0
  %194 = vmatprep.mubr.bf16.mxu0 0
  %195 = vmatmul.mubr.bf16.gmra.mxu0 %v157
  %v196 = vpop.f32.mrf.mxu0
  %v197 = vadd.f32 0.0, %v196
  %v198 = vpop.f32.mrf.mxu0
  %v199 = vpop.f32.mrf.mxu0
  %v200 = vadd.f32 0.0, %v199
  %v201 = vpop.f32.mrf.mxu0
  %202 = vmatprep.mubr.bf16.mxu0 0
  %203 = vmatmul.mubr.bf16.gmra.mxu0 %v160
  %v204 = vpop.f32.mrf.mxu0
  %v205 = vadd.f32 0.0, %v204
  %v206 = vpop.f32.mrf.mxu0
  %v207 = vpop.f32.mrf.mxu0
  %v208 = vadd.f32 0.0, %v207
  %v209 = vpop.f32.mrf.mxu0
  %210 = vdwg.mxu0
  %v211 = vpack.c.bf16 %v200, %v197
  %v212 = vpack.c.bf16 %v208, %v205
  %v213 = vld [vmem:[%s3] sm:$0xf]
  %v214 = vld [vmem:[%s3 + $0x4] sm:$0xf]
  %v215 = vld [vmem:[%s3 + $0x8] sm:$0xf]
  %v216 = vld [vmem:[%s3 + $0xc] sm:$0xf]
  %v217 = vld [vmem:[%s3 + $0x10] sm:$0xf]
  %v218 = vld [vmem:[%s3 + $0x14] sm:$0xf]
  %v219 = vld [vmem:[%s3 + $0x18] sm:$0xf]
  %v220 = vld [vmem:[%s3 + $0x1c] sm:$0xf]
  %v225 = vunpack.c.l.b16 %v217
  %v226 = vunpack.c.l.b16 %v218
  %v227 = vunpack.c.l.b16 %v219
  %v228 = vunpack.c.l.b16 %v220
  %v229 = vpack.c.b16 %v226, %v225
  %v230 = vpack.c.b16 %v228, %v227
  %v234 = vsel %vm155, %v211, 0
  %v237 = vsel %vm155, %v212, 0
  %239 = vmatprep.subr.bf16.mxu0 0
  %240 = vmatpush1.bf16.msra.mxu0 0
  %241 = vmatprep.subr.bf16.mxu0 0
  %242 = vmatpush1.bf16.msra.mxu0 0
  %243 = vmatprep.subr.bf16.mxu0 0
  %244 = vmatpush1.bf16.msra.mxu0 0
  %245 = vmatprep.subr.bf16.mxu0 0
  %246 = vmatpush1.bf16.msra.mxu0 0
  %247 = vmatprep.subr.bf16.mxu0 0
  %248 = vmatpush1.bf16.msra.mxu0 0
  %249 = vmatprep.subr.bf16.mxu0 0
  %250 = vmatpush1.bf16.msra.mxu0 0
  %251 = vmatprep.subr.bf16.mxu0 0
  %252 = vmatpush1.bf16.msra.mxu0 %v230
  %253 = vmatprep.subr.bf16.mxu0 0
  %254 = vmatpush1.bf16.msra.mxu0 %v229
  %255 = vmatprep.subr.bf16.mxu0 0
  %256 = vmatpush2.bf16.msra.mxu0 0
  %257 = vmatprep.subr.bf16.mxu0 0
  %258 = vmatpush2.bf16.msra.mxu0 0
  %259 = vmatprep.subr.bf16.mxu0 0
  %260 = vmatpush2.bf16.msra.mxu0 0
  %261 = vmatprep.subr.bf16.mxu0 0
  %262 = vmatpush2.bf16.msra.mxu0 0
  %263 = vmatprep.subr.bf16.mxu0 0
  %264 = vmatpush2.bf16.msra.mxu0 0
  %265 = vmatprep.subr.bf16.mxu0 0
  %266 = vmatpush2.bf16.msra.mxu0 0
  %267 = vmatprep.subr.bf16.mxu0 0
  %268 = vmatpush2.bf16.msra.mxu0 0
  %269 = vmatprep.subr.bf16.mxu0 0
  %270 = vmatpush2.bf16.msra.mxu0 0
  %271 = vmatprep.mubr.bf16.mxu0 0
  %272 = vmatmul.mubr.bf16.gmra.mxu0 %v234
  %v273 = vpop.f32.mrf.mxu0
  %v274 = vadd.f32 0.0, %v273
  %v275 = vpop.f32.mrf.mxu0
  %v276 = vpop.f32.mrf.mxu0
  %v277 = vadd.f32 0.0, %v276
  %v278 = vpop.f32.mrf.mxu0
  %279 = vmatprep.mubr.bf16.mxu0 0
  %280 = vmatmul.mubr.bf16.gmra.mxu0 %v237
  %v281 = vpop.f32.mrf.mxu0
  %v282 = vadd.f32 0.0, %v281
  %v283 = vpop.f32.mrf.mxu0
  %v284 = vpop.f32.mrf.mxu0
  %v285 = vadd.f32 0.0, %v284
  %v286 = vpop.f32.mrf.mxu0
  %287 = vdwg.mxu0
  %v292 = vunpack.c.l.b16 %v213
  %v293 = vunpack.c.l.b16 %v214
  %v294 = vunpack.c.l.b16 %v215
  %v295 = vunpack.c.l.b16 %v216
  %v296 = vpack.c.b16 %v293, %v292
  %v297 = vpack.c.b16 %v295, %v294
  %v301 = vsel %vm155, %v153, 0
  %v304 = vsel %vm155, %v154, 0
  %306 = vmatprep.subr.bf16.mxu0 0
  %307 = vmatpush1.bf16.msra.mxu0 0
  %308 = vmatprep.subr.bf16.mxu0 0
  %309 = vmatpush1.bf16.msra.mxu0 0
  %310 = vmatprep.subr.bf16.mxu0 0
  %311 = vmatpush1.bf16.msra.mxu0 0
  %312 = vmatprep.subr.bf16.mxu0 0
  %313 = vmatpush1.bf16.msra.mxu0 0
  %314 = vmatprep.subr.bf16.mxu0 0
  %315 = vmatpush1.bf16.msra.mxu0 0
  %316 = vmatprep.subr.bf16.mxu0 0
  %317 = vmatpush1.bf16.msra.mxu0 0
  %318 = vmatprep.subr.bf16.mxu0 0
  %319 = vmatpush1.bf16.msra.mxu0 %v297
  %320 = vmatprep.subr.bf16.mxu0 0
  %321 = vmatpush1.bf16.msra.mxu0 %v296
  %322 = vmatprep.subr.bf16.mxu0 0
  %323 = vmatpush2.bf16.msra.mxu0 0
  %324 = vmatprep.subr.bf16.mxu0 0
  %325 = vmatpush2.bf16.msra.mxu0 0
  %326 = vmatprep.subr.bf16.mxu0 0
  %327 = vmatpush2.bf16.msra.mxu0 0
  %328 = vmatprep.subr.bf16.mxu0 0
  %329 = vmatpush2.bf16.msra.mxu0 0
  %330 = vmatprep.subr.bf16.mxu0 0
  %331 = vmatpush2.bf16.msra.mxu0 0
  %332 = vmatprep.subr.bf16.mxu0 0
  %333 = vmatpush2.bf16.msra.mxu0 0
  %334 = vmatprep.subr.bf16.mxu0 0
  %335 = vmatpush2.bf16.msra.mxu0 0
  %336 = vmatprep.subr.bf16.mxu0 0
  %337 = vmatpush2.bf16.msra.mxu0 0
  %338 = vmatprep.mubr.bf16.mxu0 0
  %339 = vmatmul.mubr.bf16.gmra.mxu0 %v301
  %v340 = vpop.f32.mrf.mxu0
  %v341 = vadd.f32 %v274, %v340
  %v342 = vpop.f32.mrf.mxu0
  %v343 = vpop.f32.mrf.mxu0
  %v344 = vadd.f32 %v277, %v343
  %v345 = vpop.f32.mrf.mxu0
  %346 = vmatprep.mubr.bf16.mxu0 0
  %347 = vmatmul.mubr.bf16.gmra.mxu0 %v304
  %v348 = vpop.f32.mrf.mxu0
  %v349 = vadd.f32 %v282, %v348
  %v350 = vpop.f32.mrf.mxu0
  %v351 = vpop.f32.mrf.mxu0
  %v352 = vadd.f32 %v285, %v351
  %v353 = vpop.f32.mrf.mxu0
  %354 = vdwg.mxu0
  %v355 = vld [vmem:[%s4] sm:$0x1]
  %v357 = vlaneseq
  %v358 = vshrl.u32 %v357, 7
  %v359 = vsub.s32 0, %v358
  %v360 = vrot.slane %v355, %v359
  %v362 = vadd.f32 %v341, %v360
  %v363 = vadd.f32 %v344, %v360
  %v364 = vadd.f32 %v349, %v360
  %v365 = vadd.f32 %v352, %v360
  %v366 = vmax.f32 %v362, 0.0
  %v367 = vmax.f32 %v363, 0.0
  %v368 = vmax.f32 %v364, 0.0
  %v369 = vmax.f32 %v365, 0.0
  %v370 = vpack.c.bf16 %v367, %v366
  %v371 = vpack.c.bf16 %v369, %v368
  %372 = vmatprep.subr.bf16.mxu0 0
  %373 = vmatpush1.bf16.msra.mxu0 0
  %374 = vmatprep.subr.bf16.mxu0 0
  %375 = vmatpush1.bf16.msra.mxu0 0
  %376 = vmatprep.subr.bf16.mxu0 0
  %377 = vmatpush1.bf16.msra.mxu0 0
  %378 = vmatprep.subr.bf16.mxu0 0
  %379 = vmatpush1.bf16.msra.mxu0 0
  %380 = vmatprep.subr.bf16.mxu0 0
  %381 = vmatpush1.bf16.msra.mxu0 0
  %382 = vmatprep.subr.bf16.mxu0 0
  %383 = vmatpush1.bf16.msra.mxu0 0
  %384 = vmatprep.subr.bf16.mxu0 0
  %385 = vmatpush1.bf16.msra.mxu0 %v371
  %386 = vmatprep.subr.bf16.mxu0 0
  %387 = vmatpush1.bf16.msra.mxu0 %v370
  %388 = vmatprep.subr.bf16.mxu0 0
  %389 = vmatpush2.bf16.msra.mxu0 0
  %390 = vmatprep.subr.bf16.mxu0 0
  %391 = vmatpush2.bf16.msra.mxu0 0
  %392 = vmatprep.subr.bf16.mxu0 0
  %393 = vmatpush2.bf16.msra.mxu0 0
  %394 = vmatprep.subr.bf16.mxu0 0
  %395 = vmatpush2.bf16.msra.mxu0 0
  %396 = vmatprep.subr.bf16.mxu0 0
  %397 = vmatpush2.bf16.msra.mxu0 0
  %398 = vmatprep.subr.bf16.mxu0 0
  %399 = vmatpush2.bf16.msra.mxu0 0
  %400 = vmatprep.subr.bf16.mxu0 0
  %401 = vmatpush2.bf16.msra.mxu0 0
  %402 = vmatprep.subr.bf16.mxu0 0
  %403 = vmatpush2.bf16.msra.mxu0 0
  %404 = vmatprep.mubr.bf16.mxu0 0
  %405 = vmatmul.mubr.bf16.gmra.mxu0 %v157
  %v406 = vpop.f32.mrf.mxu0
  %v407 = vadd.f32 0.0, %v406
  %v408 = vpop.f32.mrf.mxu0
  %v409 = vpop.f32.mrf.mxu0
  %v410 = vadd.f32 0.0, %v409
  %v411 = vpop.f32.mrf.mxu0
  %412 = vmatprep.mubr.bf16.mxu0 0
  %413 = vmatmul.mubr.bf16.gmra.mxu0 %v160
  %v414 = vpop.f32.mrf.mxu0
  %v415 = vadd.f32 0.0, %v414
  %v416 = vpop.f32.mrf.mxu0
  %v417 = vpop.f32.mrf.mxu0
  %v418 = vadd.f32 0.0, %v417
  %v419 = vpop.f32.mrf.mxu0
  %420 = vdwg.mxu0
  %v421 = vpack.c.bf16 %v410, %v407
  %v422 = vpack.c.bf16 %v418, %v415
  %s423 = scalar_lea.vmem %s3, 32
  %v424 = vld [vmem:[%s423] sm:$0xf]
  %v425 = vld [vmem:[%s423 + $0x4] sm:$0xf]
  %v426 = vld [vmem:[%s423 + $0x8] sm:$0xf]
  %v427 = vld [vmem:[%s423 + $0xc] sm:$0xf]
  %v428 = vld [vmem:[%s423 + $0x10] sm:$0xf]
  %v429 = vld [vmem:[%s423 + $0x14] sm:$0xf]
  %v430 = vld [vmem:[%s423 + $0x18] sm:$0xf]
  %v431 = vld [vmem:[%s423 + $0x1c] sm:$0xf]
  %v436 = vunpack.c.l.b16 %v428
  %v437 = vunpack.c.l.b16 %v429
  %v438 = vunpack.c.l.b16 %v430
  %v439 = vunpack.c.l.b16 %v431
  %v440 = vpack.c.b16 %v437, %v436
  %v441 = vpack.c.b16 %v439, %v438
  %v445 = vsel %vm155, %v421, 0
  %v448 = vsel %vm155, %v422, 0
  %450 = vmatprep.subr.bf16.mxu0 0
  %451 = vmatpush1.bf16.msra.mxu0 0
  %452 = vmatprep.subr.bf16.mxu0 0
  %453 = vmatpush1.bf16.msra.mxu0 0
  %454 = vmatprep.subr.bf16.mxu0 0
  %455 = vmatpush1.bf16.msra.mxu0 0
  %456 = vmatprep.subr.bf16.mxu0 0
  %457 = vmatpush1.bf16.msra.mxu0 0
  %458 = vmatprep.subr.bf16.mxu0 0
  %459 = vmatpush1.bf16.msra.mxu0 0
  %460 = vmatprep.subr.bf16.mxu0 0
  %461 = vmatpush1.bf16.msra.mxu0 0
  %462 = vmatprep.subr.bf16.mxu0 0
  %463 = vmatpush1.bf16.msra.mxu0 %v441
  %464 = vmatprep.subr.bf16.mxu0 0
  %465 = vmatpush1.bf16.msra.mxu0 %v440
  %466 = vmatprep.subr.bf16.mxu0 0
  %467 = vmatpush2.bf16.msra.mxu0 0
  %468 = vmatprep.subr.bf16.mxu0 0
  %469 = vmatpush2.bf16.msra.mxu0 0
  %470 = vmatprep.subr.bf16.mxu0 0
  %471 = vmatpush2.bf16.msra.mxu0 0
  %472 = vmatprep.subr.bf16.mxu0 0
  %473 = vmatpush2.bf16.msra.mxu0 0
  %474 = vmatprep.subr.bf16.mxu0 0
  %475 = vmatpush2.bf16.msra.mxu0 0
  %476 = vmatprep.subr.bf16.mxu0 0
  %477 = vmatpush2.bf16.msra.mxu0 0
  %478 = vmatprep.subr.bf16.mxu0 0
  %479 = vmatpush2.bf16.msra.mxu0 0
  %480 = vmatprep.subr.bf16.mxu0 0
  %481 = vmatpush2.bf16.msra.mxu0 0
  %482 = vmatprep.mubr.bf16.mxu0 0
  %483 = vmatmul.mubr.bf16.gmra.mxu0 %v445
  %v484 = vpop.f32.mrf.mxu0
  %v485 = vadd.f32 0.0, %v484
  %v486 = vpop.f32.mrf.mxu0
  %v487 = vpop.f32.mrf.mxu0
  %v488 = vadd.f32 0.0, %v487
  %v489 = vpop.f32.mrf.mxu0
  %490 = vmatprep.mubr.bf16.mxu0 0
  %491 = vmatmul.mubr.bf16.gmra.mxu0 %v448
  %v492 = vpop.f32.mrf.mxu0
  %v493 = vadd.f32 0.0, %v492
  %v494 = vpop.f32.mrf.mxu0
  %v495 = vpop.f32.mrf.mxu0
  %v496 = vadd.f32 0.0, %v495
  %v497 = vpop.f32.mrf.mxu0
  %498 = vdwg.mxu0
  %v503 = vunpack.c.l.b16 %v424
  %v504 = vunpack.c.l.b16 %v425
  %v505 = vunpack.c.l.b16 %v426
  %v506 = vunpack.c.l.b16 %v427
  %v507 = vpack.c.b16 %v504, %v503
  %v508 = vpack.c.b16 %v506, %v505
  %v512 = vsel %vm155, %v370, 0
  %v515 = vsel %vm155, %v371, 0
  %517 = vmatprep.subr.bf16.mxu0 0
  %518 = vmatpush1.bf16.msra.mxu0 0
  %519 = vmatprep.subr.bf16.mxu0 0
  %520 = vmatpush1.bf16.msra.mxu0 0
  %521 = vmatprep.subr.bf16.mxu0 0
  %522 = vmatpush1.bf16.msra.mxu0 0
  %523 = vmatprep.subr.bf16.mxu0 0
  %524 = vmatpush1.bf16.msra.mxu0 0
  %525 = vmatprep.subr.bf16.mxu0 0
  %526 = vmatpush1.bf16.msra.mxu0 0
  %527 = vmatprep.subr.bf16.mxu0 0
  %528 = vmatpush1.bf16.msra.mxu0 0
  %529 = vmatprep.subr.bf16.mxu0 0
  %530 = vmatpush1.bf16.msra.mxu0 %v508
  %531 = vmatprep.subr.bf16.mxu0 0
  %532 = vmatpush1.bf16.msra.mxu0 %v507
  %533 = vmatprep.subr.bf16.mxu0 0
  %534 = vmatpush2.bf16.msra.mxu0 0
  %535 = vmatprep.subr.bf16.mxu0 0
  %536 = vmatpush2.bf16.msra.mxu0 0
  %537 = vmatprep.subr.bf16.mxu0 0
  %538 = vmatpush2.bf16.msra.mxu0 0
  %539 = vmatprep.subr.bf16.mxu0 0
  %540 = vmatpush2.bf16.msra.mxu0 0
  %541 = vmatprep.subr.bf16.mxu0 0
  %542 = vmatpush2.bf16.msra.mxu0 0
  %543 = vmatprep.subr.bf16.mxu0 0
  %544 = vmatpush2.bf16.msra.mxu0 0
  %545 = vmatprep.subr.bf16.mxu0 0
  %546 = vmatpush2.bf16.msra.mxu0 0
  %547 = vmatprep.subr.bf16.mxu0 0
  %548 = vmatpush2.bf16.msra.mxu0 0
  %549 = vmatprep.mubr.bf16.mxu0 0
  %550 = vmatmul.mubr.bf16.gmra.mxu0 %v512
  %v551 = vpop.f32.mrf.mxu0
  %v552 = vadd.f32 %v485, %v551
  %v553 = vpop.f32.mrf.mxu0
  %v554 = vpop.f32.mrf.mxu0
  %v555 = vadd.f32 %v488, %v554
  %v556 = vpop.f32.mrf.mxu0
  %557 = vmatprep.mubr.bf16.mxu0 0
  %558 = vmatmul.mubr.bf16.gmra.mxu0 %v515
  %v559 = vpop.f32.mrf.mxu0
  %v560 = vadd.f32 %v493, %v559
  %v561 = vpop.f32.mrf.mxu0
  %v562 = vpop.f32.mrf.mxu0
  %v563 = vadd.f32 %v496, %v562
  %v564 = vpop.f32.mrf.mxu0
  %565 = vdwg.mxu0
  %s566 = scalar_lea.vmem %s4, 1
  %v567 = vld [vmem:[%s566] sm:$0x1]
  %v569 = vlaneseq
  %v570 = vshrl.u32 %v569, 7
  %v571 = vsub.s32 0, %v570
  %v572 = vrot.slane %v567, %v571
  %v574 = vadd.f32 %v552, %v572
  %v575 = vadd.f32 %v555, %v572
  %v576 = vadd.f32 %v560, %v572
  %v577 = vadd.f32 %v563, %v572
  %v578 = vmax.f32 %v574, 0.0
  %v579 = vmax.f32 %v575, 0.0
  %v580 = vmax.f32 %v576, 0.0
  %v581 = vmax.f32 %v577, 0.0
  %v582 = vpack.c.bf16 %v579, %v578
  %v583 = vpack.c.bf16 %v581, %v580
  %584 = vmatprep.subr.bf16.mxu0 0
  %585 = vmatpush1.bf16.msra.mxu0 0
  %586 = vmatprep.subr.bf16.mxu0 0
  %587 = vmatpush1.bf16.msra.mxu0 0
  %588 = vmatprep.subr.bf16.mxu0 0
  %589 = vmatpush1.bf16.msra.mxu0 0
  %590 = vmatprep.subr.bf16.mxu0 0
  %591 = vmatpush1.bf16.msra.mxu0 0
  %592 = vmatprep.subr.bf16.mxu0 0
  %593 = vmatpush1.bf16.msra.mxu0 0
  %594 = vmatprep.subr.bf16.mxu0 0
  %595 = vmatpush1.bf16.msra.mxu0 0
  %596 = vmatprep.subr.bf16.mxu0 0
  %597 = vmatpush1.bf16.msra.mxu0 %v583
  %598 = vmatprep.subr.bf16.mxu0 0
  %599 = vmatpush1.bf16.msra.mxu0 %v582
  %600 = vmatprep.subr.bf16.mxu0 0
  %601 = vmatpush2.bf16.msra.mxu0 0
  %602 = vmatprep.subr.bf16.mxu0 0
  %603 = vmatpush2.bf16.msra.mxu0 0
  %604 = vmatprep.subr.bf16.mxu0 0
  %605 = vmatpush2.bf16.msra.mxu0 0
  %606 = vmatprep.subr.bf16.mxu0 0
  %607 = vmatpush2.bf16.msra.mxu0 0
  %608 = vmatprep.subr.bf16.mxu0 0
  %609 = vmatpush2.bf16.msra.mxu0 0
  %610 = vmatprep.subr.bf16.mxu0 0
  %611 = vmatpush2.bf16.msra.mxu0 0
  %612 = vmatprep.subr.bf16.mxu0 0
  %613 = vmatpush2.bf16.msra.mxu0 0
  %614 = vmatprep.subr.bf16.mxu0 0
  %615 = vmatpush2.bf16.msra.mxu0 0
  %616 = vmatprep.mubr.bf16.mxu0 0
  %617 = vmatmul.mubr.bf16.gmra.mxu0 %v157
  %v618 = vpop.f32.mrf.mxu0
  %v619 = vadd.f32 0.0, %v618
  %v620 = vpop.f32.mrf.mxu0
  %v621 = vpop.f32.mrf.mxu0
  %v622 = vadd.f32 0.0, %v621
  %v623 = vpop.f32.mrf.mxu0
  %624 = vmatprep.mubr.bf16.mxu0 0
  %625 = vmatmul.mubr.bf16.gmra.mxu0 %v160
  %v626 = vpop.f32.mrf.mxu0
  %v627 = vadd.f32 0.0, %v626
  %v628 = vpop.f32.mrf.mxu0
  %v629 = vpop.f32.mrf.mxu0
  %v630 = vadd.f32 0.0, %v629
  %v631 = vpop.f32.mrf.mxu0
  %632 = vdwg.mxu0
  %v633 = vpack.c.bf16 %v622, %v619
  %v634 = vpack.c.bf16 %v630, %v627
  %s635 = scalar_lea.vmem %s3, 64
  %v636 = vld [vmem:[%s635] sm:$0xf]
  %v637 = vld [vmem:[%s635 + $0x4] sm:$0xf]
  %v638 = vld [vmem:[%s635 + $0x8] sm:$0xf]
  %v639 = vld [vmem:[%s635 + $0xc] sm:$0xf]
  %v640 = vld [vmem:[%s635 + $0x10] sm:$0xf]
  %v641 = vld [vmem:[%s635 + $0x14] sm:$0xf]
  %v642 = vld [vmem:[%s635 + $0x18] sm:$0xf]
  %v643 = vld [vmem:[%s635 + $0x1c] sm:$0xf]
  %v648 = vunpack.c.l.b16 %v640
  %v649 = vunpack.c.l.b16 %v641
  %v650 = vunpack.c.l.b16 %v642
  %v651 = vunpack.c.l.b16 %v643
  %v652 = vpack.c.b16 %v649, %v648
  %v653 = vpack.c.b16 %v651, %v650
  %v657 = vsel %vm155, %v633, 0
  %v660 = vsel %vm155, %v634, 0
  %662 = vmatprep.subr.bf16.mxu0 0
  %663 = vmatpush1.bf16.msra.mxu0 0
  %664 = vmatprep.subr.bf16.mxu0 0
  %665 = vmatpush1.bf16.msra.mxu0 0
  %666 = vmatprep.subr.bf16.mxu0 0
  %667 = vmatpush1.bf16.msra.mxu0 0
  %668 = vmatprep.subr.bf16.mxu0 0
  %669 = vmatpush1.bf16.msra.mxu0 0
  %670 = vmatprep.subr.bf16.mxu0 0
  %671 = vmatpush1.bf16.msra.mxu0 0
  %672 = vmatprep.subr.bf16.mxu0 0
  %673 = vmatpush1.bf16.msra.mxu0 0
  %674 = vmatprep.subr.bf16.mxu0 0
  %675 = vmatpush1.bf16.msra.mxu0 %v653
  %676 = vmatprep.subr.bf16.mxu0 0
  %677 = vmatpush1.bf16.msra.mxu0 %v652
  %678 = vmatprep.subr.bf16.mxu0 0
  %679 = vmatpush2.bf16.msra.mxu0 0
  %680 = vmatprep.subr.bf16.mxu0 0
  %681 = vmatpush2.bf16.msra.mxu0 0
  %682 = vmatprep.subr.bf16.mxu0 0
  %683 = vmatpush2.bf16.msra.mxu0 0
  %684 = vmatprep.subr.bf16.mxu0 0
  %685 = vmatpush2.bf16.msra.mxu0 0
  %686 = vmatprep.subr.bf16.mxu0 0
  %687 = vmatpush2.bf16.msra.mxu0 0
  %688 = vmatprep.subr.bf16.mxu0 0
  %689 = vmatpush2.bf16.msra.mxu0 0
  %690 = vmatprep.subr.bf16.mxu0 0
  %691 = vmatpush2.bf16.msra.mxu0 0
  %692 = vmatprep.subr.bf16.mxu0 0
  %693 = vmatpush2.bf16.msra.mxu0 0
  %694 = vmatprep.mubr.bf16.mxu0 0
  %695 = vmatmul.mubr.bf16.gmra.mxu0 %v657
  %v696 = vpop.f32.mrf.mxu0
  %v697 = vadd.f32 0.0, %v696
  %v698 = vpop.f32.mrf.mxu0
  %v699 = vpop.f32.mrf.mxu0
  %v700 = vadd.f32 0.0, %v699
  %v701 = vpop.f32.mrf.mxu0
  %702 = vmatprep.mubr.bf16.mxu0 0
  %703 = vmatmul.mubr.bf16.gmra.mxu0 %v660
  %v704 = vpop.f32.mrf.mxu0
  %v705 = vadd.f32 0.0, %v704
  %v706 = vpop.f32.mrf.mxu0
  %v707 = vpop.f32.mrf.mxu0
  %v708 = vadd.f32 0.0, %v707
  %v709 = vpop.f32.mrf.mxu0
  %710 = vdwg.mxu0
  %v715 = vunpack.c.l.b16 %v636
  %v716 = vunpack.c.l.b16 %v637
  %v717 = vunpack.c.l.b16 %v638
  %v718 = vunpack.c.l.b16 %v639
  %v719 = vpack.c.b16 %v716, %v715
  %v720 = vpack.c.b16 %v718, %v717
  %v724 = vsel %vm155, %v582, 0
  %v727 = vsel %vm155, %v583, 0
  %729 = vmatprep.subr.bf16.mxu0 0
  %730 = vmatpush1.bf16.msra.mxu0 0
  %731 = vmatprep.subr.bf16.mxu0 0
  %732 = vmatpush1.bf16.msra.mxu0 0
  %733 = vmatprep.subr.bf16.mxu0 0
  %734 = vmatpush1.bf16.msra.mxu0 0
  %735 = vmatprep.subr.bf16.mxu0 0
  %736 = vmatpush1.bf16.msra.mxu0 0
  %737 = vmatprep.subr.bf16.mxu0 0
  %738 = vmatpush1.bf16.msra.mxu0 0
  %739 = vmatprep.subr.bf16.mxu0 0
  %740 = vmatpush1.bf16.msra.mxu0 0
  %741 = vmatprep.subr.bf16.mxu0 0
  %742 = vmatpush1.bf16.msra.mxu0 %v720
  %743 = vmatprep.subr.bf16.mxu0 0
  %744 = vmatpush1.bf16.msra.mxu0 %v719
  %745 = vmatprep.subr.bf16.mxu0 0
  %746 = vmatpush2.bf16.msra.mxu0 0
  %747 = vmatprep.subr.bf16.mxu0 0
  %748 = vmatpush2.bf16.msra.mxu0 0
  %749 = vmatprep.subr.bf16.mxu0 0
  %750 = vmatpush2.bf16.msra.mxu0 0
  %751 = vmatprep.subr.bf16.mxu0 0
  %752 = vmatpush2.bf16.msra.mxu0 0
  %753 = vmatprep.subr.bf16.mxu0 0
  %754 = vmatpush2.bf16.msra.mxu0 0
  %755 = vmatprep.subr.bf16.mxu0 0
  %756 = vmatpush2.bf16.msra.mxu0 0
  %757 = vmatprep.subr.bf16.mxu0 0
  %758 = vmatpush2.bf16.msra.mxu0 0
  %759 = vmatprep.subr.bf16.mxu0 0
  %760 = vmatpush2.bf16.msra.mxu0 0
  %761 = vmatprep.mubr.bf16.mxu0 0
  %762 = vmatmul.mubr.bf16.gmra.mxu0 %v724
  %v763 = vpop.f32.mrf.mxu0
  %v764 = vadd.f32 %v697, %v763
  %v765 = vpop.f32.mrf.mxu0
  %v766 = vpop.f32.mrf.mxu0
  %v767 = vadd.f32 %v700, %v766
  %v768 = vpop.f32.mrf.mxu0
  %769 = vmatprep.mubr.bf16.mxu0 0
  %770 = vmatmul.mubr.bf16.gmra.mxu0 %v727
  %v771 = vpop.f32.mrf.mxu0
  %v772 = vadd.f32 %v705, %v771
  %v773 = vpop.f32.mrf.mxu0
  %v774 = vpop.f32.mrf.mxu0
  %v775 = vadd.f32 %v708, %v774
  %v776 = vpop.f32.mrf.mxu0
  %777 = vdwg.mxu0
  %s778 = scalar_lea.vmem %s4, 2
  %v779 = vld [vmem:[%s778] sm:$0x1]
  %v781 = vlaneseq
  %v782 = vshrl.u32 %v781, 7
  %v783 = vsub.s32 0, %v782
  %v784 = vrot.slane %v779, %v783
  %v786 = vadd.f32 %v764, %v784
  %v787 = vadd.f32 %v767, %v784
  %v788 = vadd.f32 %v772, %v784
  %v789 = vadd.f32 %v775, %v784
  %v790 = vpack.c.bf16 %v141, %v141
  %v791 = vpack.c.bf16 %v787, %v786
  %v792 = vpack.c.bf16 %v789, %v788
  %v794 = vsel %vm155, %v790, 0
  %796 = vmatprep.subr.bf16.mxu0 0
  %797 = vmatpush1.bf16.msra.mxu0 0
  %798 = vmatprep.subr.bf16.mxu0 0
  %799 = vmatpush1.bf16.msra.mxu0 0
  %800 = vmatprep.subr.bf16.mxu0 0
  %801 = vmatpush1.bf16.msra.mxu0 0
  %802 = vmatprep.subr.bf16.mxu0 0
  %803 = vmatpush1.bf16.msra.mxu0 0
  %804 = vmatprep.subr.bf16.mxu0 0
  %805 = vmatpush1.bf16.msra.mxu0 0
  %806 = vmatprep.subr.bf16.mxu0 0
  %807 = vmatpush1.bf16.msra.mxu0 0
  %808 = vmatprep.subr.bf16.mxu0 0
  %809 = vmatpush1.bf16.msra.mxu0 %v792
  %810 = vmatprep.subr.bf16.mxu0 0
  %811 = vmatpush1.bf16.msra.mxu0 %v791
  %812 = vmatprep.subr.bf16.mxu0 0
  %813 = vmatpush2.bf16.msra.mxu0 0
  %814 = vmatprep.subr.bf16.mxu0 0
  %815 = vmatpush2.bf16.msra.mxu0 0
  %816 = vmatprep.subr.bf16.mxu0 0
  %817 = vmatpush2.bf16.msra.mxu0 0
  %818 = vmatprep.subr.bf16.mxu0 0
  %819 = vmatpush2.bf16.msra.mxu0 0
  %820 = vmatprep.subr.bf16.mxu0 0
  %821 = vmatpush2.bf16.msra.mxu0 0
  %822 = vmatprep.subr.bf16.mxu0 0
  %823 = vmatpush2.bf16.msra.mxu0 0
  %824 = vmatprep.subr.bf16.mxu0 0
  %825 = vmatpush2.bf16.msra.mxu0 0
  %826 = vmatprep.subr.bf16.mxu0 0
  %827 = vmatpush2.bf16.msra.mxu0 0
  %828 = vmatprep.mubr.bf16.mxu0 0
  %829 = vmatmul.mubr.bf16.gmra.mxu0 %v794
  %v830 = vpop.f32.mrf.mxu0
  %v831 = vadd.f32 0.0, %v830
  %v832 = vpop.f32.mrf.mxu0
  %v833 = vpop.f32.mrf.mxu0
  %v834 = vpop.f32.mrf.mxu0
  %835 = vdwg.mxu0
  %v836 = vmul.f32 %v831, %v148
  %v837 = vpack.c.bf16 %v836, %v836
  %v838 = vld [vmem:[%s5] sm:$0xf]
  %v839 = vld [vmem:[%s5 + $0x4] sm:$0xf]
  %v840 = vld [vmem:[%s5 + $0x8] sm:$0xf]
  %v841 = vld [vmem:[%s5 + $0xc] sm:$0xf]
  %v842 = vld [vmem:[%s6] sm:$0x1]
  %v844 = vlaneseq
  %v845 = vshrl.u32 %v844, 7
  %v846 = vsub.s32 0, %v845
  %v847 = vrot.slane %v842, %v846
  %v853 = vunpack.c.l.b16 %v838
  %v854 = vunpack.c.l.b16 %v839
  %v855 = vunpack.c.l.b16 %v840
  %v856 = vunpack.c.l.b16 %v841
  %v857 = vpack.c.b16 %v854, %v853
  %v858 = vpack.c.b16 %v856, %v855
  %v862 = vsel %vm155, %v837, 0
  %864 = vmatprep.subr.bf16.mxu0 0
  %865 = vmatpush1.bf16.msra.mxu0 0
  %866 = vmatprep.subr.bf16.mxu0 0
  %867 = vmatpush1.bf16.msra.mxu0 0
  %868 = vmatprep.subr.bf16.mxu0 0
  %869 = vmatpush1.bf16.msra.mxu0 0
  %870 = vmatprep.subr.bf16.mxu0 0
  %871 = vmatpush1.bf16.msra.mxu0 0
  %872 = vmatprep.subr.bf16.mxu0 0
  %873 = vmatpush1.bf16.msra.mxu0 0
  %874 = vmatprep.subr.bf16.mxu0 0
  %875 = vmatpush1.bf16.msra.mxu0 0
  %876 = vmatprep.subr.bf16.mxu0 0
  %877 = vmatpush1.bf16.msra.mxu0 %v858
  %878 = vmatprep.subr.bf16.mxu0 0
  %879 = vmatpush1.bf16.msra.mxu0 %v857
  %880 = vmatprep.subr.bf16.mxu0 0
  %881 = vmatpush2.bf16.msra.mxu0 0
  %882 = vmatprep.subr.bf16.mxu0 0
  %883 = vmatpush2.bf16.msra.mxu0 0
  %884 = vmatprep.subr.bf16.mxu0 0
  %885 = vmatpush2.bf16.msra.mxu0 0
  %886 = vmatprep.subr.bf16.mxu0 0
  %887 = vmatpush2.bf16.msra.mxu0 0
  %888 = vmatprep.subr.bf16.mxu0 0
  %889 = vmatpush2.bf16.msra.mxu0 0
  %890 = vmatprep.subr.bf16.mxu0 0
  %891 = vmatpush2.bf16.msra.mxu0 0
  %892 = vmatprep.subr.bf16.mxu0 0
  %893 = vmatpush2.bf16.msra.mxu0 0
  %894 = vmatprep.subr.bf16.mxu0 0
  %895 = vmatpush2.bf16.msra.mxu0 0
  %896 = vmatprep.mubr.bf16.mxu0 0
  %897 = vmatmul.mubr.bf16.gmra.mxu0 %v862
  %v898 = vpop.f32.mrf.mxu0
  %v899 = vadd.f32 %v847, %v898
  %v900 = vpop.f32.mrf.mxu0
  %v901 = vpop.f32.mrf.mxu0
  %v902 = vpop.f32.mrf.mxu0
  %903 = vdwg.mxu0
  %vm904 = vcmask 11264
  %905 = vst.msk [vmem:[%s7] sm:$0xf] %vm904, %v899
  // Predicated region
  $region30: #{tpu_custom_call.1} parent=0 // pred_check
    _
  $region31: #{tpu_custom_call.1} parent=0 // pred_check_branch
    %907 = sbr.rel (0) target = $region33
  $region32: #{tpu_custom_call.1} parent=0 // pred_region
    _
  $region33: #{tpu_custom_call.1} parent=0 // pred_fallthru
    _
  // Predicated region
  $region34: #{tpu_custom_call.1} parent=0 // pred_check
    _
  $region35: #{tpu_custom_call.1} parent=0 // pred_check_branch
    %909 = sbr.rel (0) target = $region37
  $region36: #{tpu_custom_call.1} parent=0 // pred_region
    _
  $region37: #{tpu_custom_call.1} parent=0 // pred_fallthru
    _

</llo_original>
